<compile_context>
chip_gen: v6e
topology: v6e:2x2x1
jax: 0.10.0
libtpu: 0.0.40
codegen_flags: <defaults>
</compile_context>

<pallas_src>
import functools

import jax
import jax.numpy as jnp
from jax.experimental import pallas as pl
from jax.experimental.pallas import tpu as pltpu


def _gelu(x):
    # Exact (erf) GELU, matching torch.nn.GELU() default.
    return 0.5 * x * (1.0 + jax.lax.erf(x / jnp.sqrt(2.0).astype(x.dtype)))


def _readout_kernel(num_res, compute_dtype,
                    l2r_ref, r2l_ref, fa_ref, fb_ref,
                    zw1_ref, zb1_ref, zw2_ref, zb2_ref,
                    ln_g_ref, ln_b_ref, lw_ref, lb_ref,
                    out_ref):
    # Concatenate the two directional embeddings in VMEM (avoids a
    # wrapper-side HBM round-trip of the concatenated activations).
    x = jnp.concatenate([l2r_ref[...], r2l_ref[...]], axis=-1).astype(jnp.float32)

    fa = fa_ref[...]          # (1, 2E) per-batch FiLM scale (sublane broadcast)
    fb = fb_ref[...]          # (1, 2E) per-batch FiLM shift
    w1 = zw1_ref[...]         # (2E, M)  (already compute_dtype)
    b1 = zb1_ref[...]         # (1, M)   f32
    w2 = zw2_ref[...]         # (M, 2E)
    b2 = zb2_ref[...]         # (1, 2E)
    gamma = ln_g_ref[...]     # (1, 2E)
    beta = ln_b_ref[...]      # (1, 2E)
    eps = jnp.float32(1e-5)

    # Loop-invariant fusion of LayerNorm affine + FiLM:
    #   fa * (gamma * yhat + beta) + fb  ==  ga * yhat + gb
    ga = fa * gamma
    gb = fa * beta + fb

    def body(_, x):
        # z_layer: GELU(Linear2(GELU(Linear1(x))))  (trailing-GELU quirk kept)
        h = _gelu(jnp.dot(x.astype(compute_dtype), w1,
                          preferred_element_type=jnp.float32) + b1)
        z = _gelu(jnp.dot(h.astype(compute_dtype), w2,
                          preferred_element_type=jnp.float32) + b2)
        # LayerNorm(x + z) — all elementwise math stays f32.
        y = x + z
        mean = jnp.mean(y, axis=-1, keepdims=True)
        var = jnp.mean((y - mean) ** 2, axis=-1, keepdims=True)
        yhat = (y - mean) * jax.lax.rsqrt(var + eps)
        # fused LN-affine + FiLM
        return ga * yhat + gb

    x = jax.lax.fori_loop(0, num_res, body, x, unroll=True)

    # Un-padded logits head: S equals the output array's full last dim, so the
    # writeback is 8x smaller than a 128-lane-padded head.
    out_ref[...] = (jnp.dot(x.astype(compute_dtype), lw_ref[...],
                            preferred_element_type=jnp.float32)
                    + lb_ref[...]).astype(out_ref.dtype)


def concat_residual_readout(l2r_embed, r2l_embed, temb, params, *, num_residuals,
                            tile_rows=2048, compute_dtype=jnp.float32):
    B, L, E = l2r_embed.shape
    assert r2l_embed.shape == (B, L, E)
    assert temb.shape == (B, E)

    two_e = 2 * E
    M = params["z_w1"].shape[1]
    S = params["logits_w"].shape[1]

    # --- glue (tiny per-batch compute): temb MLP + loop-invariant FiLM -------
    t = _gelu(temb @ params["mlp_w1"] + params["mlp_b1"])
    t = _gelu(t @ params["mlp_w2"] + params["mlp_b2"])        # (B, 4E)
    film = t @ params["film_w"] + params["film_b"]            # (B, 4E)
    film_a = film[:, None, :two_e]                            # (B, 1, 2E)
    film_b = film[:, None, two_e:]                            # (B, 1, 2E)

    # Seq tile: one big tile per batch when it fits (grid parallelism then
    # comes from the batch axis); otherwise 8-row-aligned tiles with a
    # (masked) partial tail — no wrapper jnp.pad / extra HBM copy.
    if L <= tile_rows:
        tl = L
    else:
        tl = max(8, (tile_rows // 8) * 8)
    n_tiles = pl.cdiv(L, tl)

    # Cast matmul weights once in the wrapper (no per-grid-step re-cast).
    cd = compute_dtype
    z_w1 = params["z_w1"].astype(cd)
    z_w2 = params["z_w2"].astype(cd)
    lw = params["logits_w"].astype(cd)

    kernel = functools.partial(_readout_kernel, num_residuals, cd)

    row_spec = lambda w: pl.BlockSpec((None, tl, w), lambda b, i: (b, i, 0))
    film_spec = pl.BlockSpec((None, 1, two_e), lambda b, i: (b, 0, 0))
    full_spec = lambda shape: pl.BlockSpec(shape, lambda b, i: (0, 0))

    out = pl.pallas_call(
        kernel,
        out_shape=jax.ShapeDtypeStruct((B, L, S), jnp.float32),
        grid=(B, n_tiles),
        in_specs=[
            row_spec(E),                     # l2r rows      (tl, E)
            row_spec(E),                     # r2l rows      (tl, E)
            film_spec,                       # film a        (1, 2E)
            film_spec,                       # film b        (1, 2E)
            full_spec((two_e, M)),           # z_w1
            full_spec((1, M)),               # z_b1
            full_spec((M, two_e)),           # z_w2
            full_spec((1, two_e)),           # z_b2
            full_spec((1, two_e)),           # ln gamma
            full_spec((1, two_e)),           # ln beta
            full_spec((two_e, S)),           # logits_w
            full_spec((1, S)),               # logits_b
        ],
        out_specs=pl.BlockSpec((None, tl, S), lambda b, i: (b, i, 0)),
        compiler_params=pltpu.CompilerParams(
            dimension_semantics=("parallel", "parallel")),
    )(l2r_embed, r2l_embed, film_a, film_b,
      z_w1, params["z_b1"].reshape(1, M),
      z_w2, params["z_b2"].reshape(1, two_e),
      params["ln_g"].reshape(1, two_e), params["ln_b"].reshape(1, two_e),
      lw, params["logits_b"].reshape(1, S))

    return out


def _reference(l2r_embed, r2l_embed, temb, params, *, num_residuals):
    """Pure-JAX reference mirroring the PyTorch forward."""
    two_e = 2 * l2r_embed.shape[-1]
    x = jnp.concatenate([l2r_embed, r2l_embed], axis=-1)
    t = _gelu(temb @ params["mlp_w1"] + params["mlp_b1"])
    t = _gelu(t @ params["mlp_w2"] + params["mlp_b2"])
    for _ in range(num_residuals):
        film = t @ params["film_w"] + params["film_b"]
        a = film[:, None, :two_e]
        b = film[:, None, two_e:]
        h = _gelu(x @ params["z_w1"] + params["z_b1"])
        z = _gelu(h @ params["z_w2"] + params["z_b2"])
        y = x + z
        mean = jnp.mean(y, axis=-1, keepdims=True)
        var = jnp.mean((y - mean) ** 2, axis=-1, keepdims=True)
        y = (y - mean) * jax.lax.rsqrt(var + 1e-5)
        y = y * params["ln_g"] + params["ln_b"]
        x = a * y + b
    return x @ params["logits_w"] + params["logits_b"]


def _init_params(key, embed_dim, mlp_dim, out_dim):
    E, M, S = embed_dim, mlp_dim, out_dim
    keys = jax.random.split(key, 8)
    n = lambda k, shape, scale=0.05: scale * jax.random.normal(k, shape, jnp.float32)
    return {
        # temb MLP: [E, M, 4E]
        "mlp_w1": n(keys[0], (E, M)), "mlp_b1": jnp.zeros((M,), jnp.float32),
        "mlp_w2": n(keys[1], (M, 4 * E)), "mlp_b2": jnp.zeros((4 * E,), jnp.float32),
        # film_params_layer: Linear(4E, 4E)
        "film_w": n(keys[2], (4 * E, 4 * E)),
        "film_b": 0.05 * jax.random.normal(keys[3], (4 * E,), jnp.float32),
        # z_layer: [2E, M, 2E]
        "z_w1": n(keys[4], (2 * E, M)), "z_b1": jnp.zeros((M,), jnp.float32),
        "z_w2": n(keys[5], (M, 2 * E)), "z_b2": jnp.zeros((2 * E,), jnp.float32),
        # LayerNorm(2E)
        "ln_g": jnp.ones((2 * E,), jnp.float32),
        "ln_b": jnp.zeros((2 * E,), jnp.float32),
        # logits: Linear(2E, S)
        "logits_w": n(keys[6], (2 * E, S)),
        "logits_b": 0.05 * jax.random.normal(keys[7], (S,), jnp.float32),
    }


if __name__ == "__main__":
    # config: embed_dim=32, mlp_dim=64, data.S=16, num_output_ffresiduals=2
    B, L, E, M, S, NUM_RES = 2, 8, 32, 64, 16, 2

    key = jax.random.PRNGKey(0)
    k_l2r, k_r2l, k_t, k_p = jax.random.split(key, 4)
    l2r = jax.random.normal(k_l2r, (B, L, E), jnp.float32)
    r2l = jax.random.normal(k_r2l, (B, L, E), jnp.float32)
    temb = jax.random.normal(k_t, (B, E), jnp.float32)
    params = _init_params(k_p, E, M, S)

    # f32 compute_dtype keeps the torch (f32) numerics; pass
    # compute_dtype=jnp.bfloat16 on v6e/v7x for more MXU headroom (relax the
    # tolerance below to ~2e-2 if you do).
    out = concat_residual_readout(l2r, r2l, temb, params, num_residuals=NUM_RES)
    out = jax.block_until_ready(out)

    ref = _reference(l2r, r2l, temb, params, num_residuals=NUM_RES)
    assert out.shape == (B, L, S)
    assert jnp.allclose(out, ref, atol=1e-4, rtol=1e-4), (
        float(jnp.max(jnp.abs(out - ref))))

    print("KERNEL_OK")
</pallas_src>

<mosaic_0001>
module attributes {stable_mosaic.version = 11 : i64} {
  func.func @_readout_kernel(%arg0: i32, %arg1: i32, %arg2: memref<1x8x32xf32, #tpu.memory_space<vmem>>, %arg3: memref<1x8x32xf32, #tpu.memory_space<vmem>>, %arg4: memref<1x1x64xf32, #tpu.memory_space<vmem>>, %arg5: memref<1x1x64xf32, #tpu.memory_space<vmem>>, %arg6: memref<64x64xf32, #tpu.memory_space<vmem>>, %arg7: memref<1x64xf32, #tpu.memory_space<vmem>>, %arg8: memref<64x64xf32, #tpu.memory_space<vmem>>, %arg9: memref<1x64xf32, #tpu.memory_space<vmem>>, %arg10: memref<1x64xf32, #tpu.memory_space<vmem>>, %arg11: memref<1x64xf32, #tpu.memory_space<vmem>>, %arg12: memref<64x16xf32, #tpu.memory_space<vmem>>, %arg13: memref<1x16xf32, #tpu.memory_space<vmem>>, %arg14: memref<1x8x16xf32, #tpu.memory_space<vmem>>) attributes {dimension_semantics = [#tpu.dimension_semantics<parallel>, #tpu.dimension_semantics<parallel>], iteration_bounds = array<i64: 2, 1>, scalar_prefetch = 0 : i64, scratch_operands = 0 : i64, tpu.core_type = #tpu.core_type<tc>, window_params = [{transform_indices = @transform_0, window_bounds = array<i64: 1, 8, 32>}, {transform_indices = @transform_1, window_bounds = array<i64: 1, 8, 32>}, {transform_indices = @transform_2, window_bounds = array<i64: 1, 1, 64>}, {transform_indices = @transform_3, window_bounds = array<i64: 1, 1, 64>}, {pipeline_mode = #tpu.pipeline_mode<synchronous>, transform_indices = @transform_4, window_bounds = array<i64: 64, 64>}, {pipeline_mode = #tpu.pipeline_mode<synchronous>, transform_indices = @transform_5, window_bounds = array<i64: 1, 64>}, {pipeline_mode = #tpu.pipeline_mode<synchronous>, transform_indices = @transform_6, window_bounds = array<i64: 64, 64>}, {pipeline_mode = #tpu.pipeline_mode<synchronous>, transform_indices = @transform_7, window_bounds = array<i64: 1, 64>}, {pipeline_mode = #tpu.pipeline_mode<synchronous>, transform_indices = @transform_8, window_bounds = array<i64: 1, 64>}, {pipeline_mode = #tpu.pipeline_mode<synchronous>, transform_indices = @transform_9, window_bounds = array<i64: 1, 64>}, {pipeline_mode = #tpu.pipeline_mode<synchronous>, transform_indices = @transform_10, window_bounds = array<i64: 64, 16>}, {pipeline_mode = #tpu.pipeline_mode<synchronous>, transform_indices = @transform_11, window_bounds = array<i64: 1, 16>}, {transform_indices = @transform_12, window_bounds = array<i64: 1, 8, 16>}]} {
    %c0 = arith.constant 0 : index
    %c0_0 = arith.constant 0 : index
    %c0_1 = arith.constant 0 : index
    %0 = vector.load %arg2[%c0, %c0_0, %c0_1] : memref<1x8x32xf32, #tpu.memory_space<vmem>>, vector<1x8x32xf32>
    %1 = vector.shape_cast %0 : vector<1x8x32xf32> to vector<8x32xf32>
    %c0_2 = arith.constant 0 : index
    %c0_3 = arith.constant 0 : index
    %c0_4 = arith.constant 0 : index
    %2 = vector.load %arg3[%c0_2, %c0_3, %c0_4] : memref<1x8x32xf32, #tpu.memory_space<vmem>>, vector<1x8x32xf32>
    %3 = vector.shape_cast %2 : vector<1x8x32xf32> to vector<8x32xf32>
    %4 = tpu.concatenate %1, %3 in 1 : vector<8x32xf32>, vector<8x32xf32> -> vector<8x64xf32>
    %c0_5 = arith.constant 0 : index
    %c0_6 = arith.constant 0 : index
    %c0_7 = arith.constant 0 : index
    %5 = vector.load %arg4[%c0_5, %c0_6, %c0_7] : memref<1x1x64xf32, #tpu.memory_space<vmem>>, vector<1x1x64xf32>
    %6 = vector.shape_cast %5 : vector<1x1x64xf32> to vector<1x64xf32>
    %c0_8 = arith.constant 0 : index
    %c0_9 = arith.constant 0 : index
    %c0_10 = arith.constant 0 : index
    %7 = vector.load %arg5[%c0_8, %c0_9, %c0_10] : memref<1x1x64xf32, #tpu.memory_space<vmem>>, vector<1x1x64xf32>
    %8 = vector.shape_cast %7 : vector<1x1x64xf32> to vector<1x64xf32>
    %c0_11 = arith.constant 0 : index
    %c0_12 = arith.constant 0 : index
    %9 = vector.load %arg6[%c0_11, %c0_12] : memref<64x64xf32, #tpu.memory_space<vmem>>, vector<64x64xf32>
    %c0_13 = arith.constant 0 : index
    %c0_14 = arith.constant 0 : index
    %10 = vector.load %arg7[%c0_13, %c0_14] : memref<1x64xf32, #tpu.memory_space<vmem>>, vector<1x64xf32>
    %c0_15 = arith.constant 0 : index
    %c0_16 = arith.constant 0 : index
    %11 = vector.load %arg8[%c0_15, %c0_16] : memref<64x64xf32, #tpu.memory_space<vmem>>, vector<64x64xf32>
    %c0_17 = arith.constant 0 : index
    %c0_18 = arith.constant 0 : index
    %12 = vector.load %arg9[%c0_17, %c0_18] : memref<1x64xf32, #tpu.memory_space<vmem>>, vector<1x64xf32>
    %c0_19 = arith.constant 0 : index
    %c0_20 = arith.constant 0 : index
    %13 = vector.load %arg10[%c0_19, %c0_20] : memref<1x64xf32, #tpu.memory_space<vmem>>, vector<1x64xf32>
    %c0_21 = arith.constant 0 : index
    %c0_22 = arith.constant 0 : index
    %14 = vector.load %arg11[%c0_21, %c0_22] : memref<1x64xf32, #tpu.memory_space<vmem>>, vector<1x64xf32>
    %15 = arith.mulf %6, %13 : vector<1x64xf32>
    %16 = arith.mulf %6, %14 : vector<1x64xf32>
    %17 = arith.addf %16, %8 : vector<1x64xf32>
    %cst = arith.constant 9.99999974E-6 : f32
    %c0_i32 = arith.constant 0 : i32
    %cst_23 = arith.constant dense<0.000000e+00> : vector<8x64xf32>
    %18 = tpu.matmul %4, %9, %cst_23 {dimension_numbers = #tpu.dot_dimension_numbers<[1], [0], [0], [1], [0, 0, 1, 1], [], []>} : vector<8x64xf32>, vector<64x64xf32>, vector<8x64xf32> -> vector<8x64xf32>
    %19 = vector.broadcast %10 : vector<1x64xf32> to vector<8x64xf32>
    %20 = arith.addf %18, %19 : vector<8x64xf32>
    %cst_24 = arith.constant 5.000000e-01 : f32
    %21 = vector.broadcast %cst_24 : f32 to vector<8x64xf32>
    %22 = arith.mulf %21, %20 : vector<8x64xf32>
    %cst_25 = arith.constant 2.000000e+00 : f32
    %23 = math.sqrt %cst_25 : f32
    %24 = vector.broadcast %23 : f32 to vector<8x64xf32>
    %25 = arith.divf %20, %24 : vector<8x64xf32>
    %26 = math.erf %25 : vector<8x64xf32>
    %cst_26 = arith.constant 1.000000e+00 : f32
    %27 = vector.broadcast %cst_26 : f32 to vector<8x64xf32>
    %28 = arith.addf %27, %26 : vector<8x64xf32>
    %29 = arith.mulf %22, %28 : vector<8x64xf32>
    %cst_27 = arith.constant dense<0.000000e+00> : vector<8x64xf32>
    %30 = tpu.matmul %29, %11, %cst_27 {dimension_numbers = #tpu.dot_dimension_numbers<[1], [0], [0], [1], [0, 0, 1, 1], [], []>} : vector<8x64xf32>, vector<64x64xf32>, vector<8x64xf32> -> vector<8x64xf32>
    %31 = vector.broadcast %12 : vector<1x64xf32> to vector<8x64xf32>
    %32 = arith.addf %30, %31 : vector<8x64xf32>
    %cst_28 = arith.constant 5.000000e-01 : f32
    %33 = vector.broadcast %cst_28 : f32 to vector<8x64xf32>
    %34 = arith.mulf %33, %32 : vector<8x64xf32>
    %cst_29 = arith.constant 2.000000e+00 : f32
    %35 = math.sqrt %cst_29 : f32
    %36 = vector.broadcast %35 : f32 to vector<8x64xf32>
    %37 = arith.divf %32, %36 : vector<8x64xf32>
    %38 = math.erf %37 : vector<8x64xf32>
    %cst_30 = arith.constant 1.000000e+00 : f32
    %39 = vector.broadcast %cst_30 : f32 to vector<8x64xf32>
    %40 = arith.addf %39, %38 : vector<8x64xf32>
    %41 = arith.mulf %34, %40 : vector<8x64xf32>
    %42 = arith.addf %4, %41 : vector<8x64xf32>
    %cst_31 = arith.constant dense<0.000000e+00> : vector<8xf32>
    %43 = vector.multi_reduction <add>, %42, %cst_31 [1] : vector<8x64xf32> to vector<8xf32>
    %44 = vector.shape_cast %43 : vector<8xf32> to vector<8x1xf32>
    %cst_32 = arith.constant 6.400000e+01 : f32
    %45 = vector.broadcast %cst_32 : f32 to vector<8x1xf32>
    %46 = arith.divf %44, %45 : vector<8x1xf32>
    %47 = vector.broadcast %46 : vector<8x1xf32> to vector<8x64xf32>
    %48 = arith.subf %42, %47 : vector<8x64xf32>
    %49 = arith.mulf %48, %48 : vector<8x64xf32>
    %cst_33 = arith.constant dense<0.000000e+00> : vector<8xf32>
    %50 = vector.multi_reduction <add>, %49, %cst_33 [1] : vector<8x64xf32> to vector<8xf32>
    %51 = vector.shape_cast %50 : vector<8xf32> to vector<8x1xf32>
    %cst_34 = arith.constant 6.400000e+01 : f32
    %52 = vector.broadcast %cst_34 : f32 to vector<8x1xf32>
    %53 = arith.divf %51, %52 : vector<8x1xf32>
    %54 = vector.broadcast %46 : vector<8x1xf32> to vector<8x64xf32>
    %55 = arith.subf %42, %54 : vector<8x64xf32>
    %56 = vector.broadcast %cst : f32 to vector<8x1xf32>
    %57 = arith.addf %53, %56 : vector<8x1xf32>
    %58 = math.rsqrt %57 : vector<8x1xf32>
    %59 = vector.broadcast %58 : vector<8x1xf32> to vector<8x64xf32>
    %60 = arith.mulf %55, %59 : vector<8x64xf32>
    %61 = vector.broadcast %15 : vector<1x64xf32> to vector<8x64xf32>
    %62 = arith.mulf %61, %60 : vector<8x64xf32>
    %63 = vector.broadcast %17 : vector<1x64xf32> to vector<8x64xf32>
    %64 = arith.addf %62, %63 : vector<8x64xf32>
    %c1_i32 = arith.constant 1 : i32
    %cst_35 = arith.constant dense<0.000000e+00> : vector<8x64xf32>
    %65 = tpu.matmul %64, %9, %cst_35 {dimension_numbers = #tpu.dot_dimension_numbers<[1], [0], [0], [1], [0, 0, 1, 1], [], []>} : vector<8x64xf32>, vector<64x64xf32>, vector<8x64xf32> -> vector<8x64xf32>
    %66 = vector.broadcast %10 : vector<1x64xf32> to vector<8x64xf32>
    %67 = arith.addf %65, %66 : vector<8x64xf32>
    %cst_36 = arith.constant 5.000000e-01 : f32
    %68 = vector.broadcast %cst_36 : f32 to vector<8x64xf32>
    %69 = arith.mulf %68, %67 : vector<8x64xf32>
    %cst_37 = arith.constant 2.000000e+00 : f32
    %70 = math.sqrt %cst_37 : f32
    %71 = vector.broadcast %70 : f32 to vector<8x64xf32>
    %72 = arith.divf %67, %71 : vector<8x64xf32>
    %73 = math.erf %72 : vector<8x64xf32>
    %cst_38 = arith.constant 1.000000e+00 : f32
    %74 = vector.broadcast %cst_38 : f32 to vector<8x64xf32>
    %75 = arith.addf %74, %73 : vector<8x64xf32>
    %76 = arith.mulf %69, %75 : vector<8x64xf32>
    %cst_39 = arith.constant dense<0.000000e+00> : vector<8x64xf32>
    %77 = tpu.matmul %76, %11, %cst_39 {dimension_numbers = #tpu.dot_dimension_numbers<[1], [0], [0], [1], [0, 0, 1, 1], [], []>} : vector<8x64xf32>, vector<64x64xf32>, vector<8x64xf32> -> vector<8x64xf32>
    %78 = vector.broadcast %12 : vector<1x64xf32> to vector<8x64xf32>
    %79 = arith.addf %77, %78 : vector<8x64xf32>
    %cst_40 = arith.constant 5.000000e-01 : f32
    %80 = vector.broadcast %cst_40 : f32 to vector<8x64xf32>
    %81 = arith.mulf %80, %79 : vector<8x64xf32>
    %cst_41 = arith.constant 2.000000e+00 : f32
    %82 = math.sqrt %cst_41 : f32
    %83 = vector.broadcast %82 : f32 to vector<8x64xf32>
    %84 = arith.divf %79, %83 : vector<8x64xf32>
    %85 = math.erf %84 : vector<8x64xf32>
    %cst_42 = arith.constant 1.000000e+00 : f32
    %86 = vector.broadcast %cst_42 : f32 to vector<8x64xf32>
    %87 = arith.addf %86, %85 : vector<8x64xf32>
    %88 = arith.mulf %81, %87 : vector<8x64xf32>
    %89 = arith.addf %64, %88 : vector<8x64xf32>
    %cst_43 = arith.constant dense<0.000000e+00> : vector<8xf32>
    %90 = vector.multi_reduction <add>, %89, %cst_43 [1] : vector<8x64xf32> to vector<8xf32>
    %91 = vector.shape_cast %90 : vector<8xf32> to vector<8x1xf32>
    %cst_44 = arith.constant 6.400000e+01 : f32
    %92 = vector.broadcast %cst_44 : f32 to vector<8x1xf32>
    %93 = arith.divf %91, %92 : vector<8x1xf32>
    %94 = vector.broadcast %93 : vector<8x1xf32> to vector<8x64xf32>
    %95 = arith.subf %89, %94 : vector<8x64xf32>
    %96 = arith.mulf %95, %95 : vector<8x64xf32>
    %cst_45 = arith.constant dense<0.000000e+00> : vector<8xf32>
    %97 = vector.multi_reduction <add>, %96, %cst_45 [1] : vector<8x64xf32> to vector<8xf32>
    %98 = vector.shape_cast %97 : vector<8xf32> to vector<8x1xf32>
    %cst_46 = arith.constant 6.400000e+01 : f32
    %99 = vector.broadcast %cst_46 : f32 to vector<8x1xf32>
    %100 = arith.divf %98, %99 : vector<8x1xf32>
    %101 = vector.broadcast %93 : vector<8x1xf32> to vector<8x64xf32>
    %102 = arith.subf %89, %101 : vector<8x64xf32>
    %103 = vector.broadcast %cst : f32 to vector<8x1xf32>
    %104 = arith.addf %100, %103 : vector<8x1xf32>
    %105 = math.rsqrt %104 : vector<8x1xf32>
    %106 = vector.broadcast %105 : vector<8x1xf32> to vector<8x64xf32>
    %107 = arith.mulf %102, %106 : vector<8x64xf32>
    %108 = vector.broadcast %15 : vector<1x64xf32> to vector<8x64xf32>
    %109 = arith.mulf %108, %107 : vector<8x64xf32>
    %110 = vector.broadcast %17 : vector<1x64xf32> to vector<8x64xf32>
    %111 = arith.addf %109, %110 : vector<8x64xf32>
    %c0_47 = arith.constant 0 : index
    %c0_48 = arith.constant 0 : index
    %112 = vector.load %arg12[%c0_47, %c0_48] : memref<64x16xf32, #tpu.memory_space<vmem>>, vector<64x16xf32>
    %cst_49 = arith.constant dense<0.000000e+00> : vector<8x16xf32>
    %113 = tpu.matmul %111, %112, %cst_49 {dimension_numbers = #tpu.dot_dimension_numbers<[1], [0], [0], [1], [0, 0, 1, 1], [], []>} : vector<8x64xf32>, vector<64x16xf32>, vector<8x16xf32> -> vector<8x16xf32>
    %c0_50 = arith.constant 0 : index
    %c0_51 = arith.constant 0 : index
    %114 = vector.load %arg13[%c0_50, %c0_51] : memref<1x16xf32, #tpu.memory_space<vmem>>, vector<1x16xf32>
    %115 = vector.broadcast %114 : vector<1x16xf32> to vector<8x16xf32>
    %116 = arith.addf %113, %115 : vector<8x16xf32>
    %c0_52 = arith.constant 0 : index
    %c0_53 = arith.constant 0 : index
    %c0_54 = arith.constant 0 : index
    %117 = vector.load %arg14[%c0_52, %c0_53, %c0_54] : memref<1x8x16xf32, #tpu.memory_space<vmem>>, vector<1x8x16xf32>
    %118 = vector.shape_cast %117 : vector<1x8x16xf32> to vector<8x16xf32>
    %119 = vector.shape_cast %116 : vector<8x16xf32> to vector<1x8x16xf32>
    tpu.vector_store %arg14[%c0_52, %c0_53, %c0_54], %119 {strides = array<i32>} : memref<1x8x16xf32, #tpu.memory_space<vmem>>, vector<1x8x16xf32>,
    return
  }
  func.func @transform_0(%arg0: i32, %arg1: i32) -> (i32, i32, i32) {
    %c0_i32 = arith.constant 0 : i32
    %c0_i32_0 = arith.constant 0 : i32
    return %arg0, %arg1, %c0_i32 : i32, i32, i32
  }
  func.func @transform_1(%arg0: i32, %arg1: i32) -> (i32, i32, i32) {
    %c0_i32 = arith.constant 0 : i32
    %c0_i32_0 = arith.constant 0 : i32
    return %arg0, %arg1, %c0_i32 : i32, i32, i32
  }
  func.func @transform_2(%arg0: i32, %arg1: i32) -> (i32, i32, i32) {
    %c0_i32 = arith.constant 0 : i32
    %c0_i32_0 = arith.constant 0 : i32
    %c0_i32_1 = arith.constant 0 : i32
    return %arg0, %c0_i32, %c0_i32_0 : i32, i32, i32
  }
  func.func @transform_3(%arg0: i32, %arg1: i32) -> (i32, i32, i32) {
    %c0_i32 = arith.constant 0 : i32
    %c0_i32_0 = arith.constant 0 : i32
    %c0_i32_1 = arith.constant 0 : i32
    return %arg0, %c0_i32, %c0_i32_0 : i32, i32, i32
  }
  func.func @transform_4(%arg0: i32, %arg1: i32) -> (i32, i32) {
    %c0_i32 = arith.constant 0 : i32
    %c0_i32_0 = arith.constant 0 : i32
    %c0_i32_1 = arith.constant 0 : i32
    return %c0_i32, %c0_i32_0 : i32, i32
  }
  func.func @transform_5(%arg0: i32, %arg1: i32) -> (i32, i32) {
    %c0_i32 = arith.constant 0 : i32
    %c0_i32_0 = arith.constant 0 : i32
    %c0_i32_1 = arith.constant 0 : i32
    return %c0_i32, %c0_i32_0 : i32, i32
  }
  func.func @transform_6(%arg0: i32, %arg1: i32) -> (i32, i32) {
    %c0_i32 = arith.constant 0 : i32
    %c0_i32_0 = arith.constant 0 : i32
    %c0_i32_1 = arith.constant 0 : i32
    return %c0_i32, %c0_i32_0 : i32, i32
  }
  func.func @transform_7(%arg0: i32, %arg1: i32) -> (i32, i32) {
    %c0_i32 = arith.constant 0 : i32
    %c0_i32_0 = arith.constant 0 : i32
    %c0_i32_1 = arith.constant 0 : i32
    return %c0_i32, %c0_i32_0 : i32, i32
  }
  func.func @transform_8(%arg0: i32, %arg1: i32) -> (i32, i32) {
    %c0_i32 = arith.constant 0 : i32
    %c0_i32_0 = arith.constant 0 : i32
    %c0_i32_1 = arith.constant 0 : i32
    return %c0_i32, %c0_i32_0 : i32, i32
  }
  func.func @transform_9(%arg0: i32, %arg1: i32) -> (i32, i32) {
    %c0_i32 = arith.constant 0 : i32
    %c0_i32_0 = arith.constant 0 : i32
    %c0_i32_1 = arith.constant 0 : i32
    return %c0_i32, %c0_i32_0 : i32, i32
  }
  func.func @transform_10(%arg0: i32, %arg1: i32) -> (i32, i32) {
    %c0_i32 = arith.constant 0 : i32
    %c0_i32_0 = arith.constant 0 : i32
    %c0_i32_1 = arith.constant 0 : i32
    return %c0_i32, %c0_i32_0 : i32, i32
  }
  func.func @transform_11(%arg0: i32, %arg1: i32) -> (i32, i32) {
    %c0_i32 = arith.constant 0 : i32
    %c0_i32_0 = arith.constant 0 : i32
    %c0_i32_1 = arith.constant 0 : i32
    return %c0_i32, %c0_i32_0 : i32, i32
  }
  func.func @transform_12(%arg0: i32, %arg1: i32) -> (i32, i32, i32) {
    %c0_i32 = arith.constant 0 : i32
    %c0_i32_0 = arith.constant 0 : i32
    return %arg0, %arg1, %c0_i32 : i32, i32, i32
  }
}

</mosaic_0001>

<llo_original>
// kernel: tpu_custom_call.1
$region0: #{tpu_custom_call.1}
  #allocation0 [shape = 'u32[]', space=smem, size = 0x4, offset = 0x4, fixed_abs, tag = 'smem constant byte address 0x4 - core index']
  #allocation1 [shape = 'u32[144,128]{1,0:T(1,128)}', space=vmem, size = 0x12000, scoped, tag = 'internal scratch']
  %s0 = inlined_call_operand.vmem [shape: f32[2,8,32], index: 0, kind: input, shape index: {}]
  %s1 = inlined_call_operand.hbm [shape: f32[2,8,32], index: 1, kind: input, shape index: {}]
  %s2 = inlined_call_operand.vmem [shape: f32[2,1,64], index: 2, kind: input, shape index: {}]
  %s3 = inlined_call_operand.hbm [shape: f32[2,1,64], index: 3, kind: input, shape index: {}]
  %s4 = inlined_call_operand.vmem [shape: f32[64,64], index: 4, kind: input, shape index: {}]
  %s5 = inlined_call_operand.hbm [shape: f32[1,64], index: 5, kind: input, shape index: {}]
  %s6 = inlined_call_operand.hbm [shape: f32[64,64], index: 6, kind: input, shape index: {}]
  %s7 = inlined_call_operand.hbm [shape: f32[1,64], index: 7, kind: input, shape index: {}]
  %s8 = inlined_call_operand.hbm [shape: f32[1,64], index: 8, kind: input, shape index: {}]
  %s9 = inlined_call_operand.hbm [shape: f32[1,64], index: 9, kind: input, shape index: {}]
  %s10 = inlined_call_operand.vmem [shape: f32[64,16], index: 10, kind: input, shape index: {}]
  %s11 = inlined_call_operand.vmem [shape: f32[1,16], index: 11, kind: input, shape index: {}]
  %s12 = inlined_call_operand.hbm [shape: f32[2,8,16], index: 12, kind: output, shape index: {}]
  %s13 = sld [smem:[#allocation0]]
  $region109: #{tpu_custom_call.1} parent=0
    _
  %s15 = ssub.s32 1, %s13
  %s16 = scalar_select 0, %s15, %s13
  $region1: #{tpu_custom_call.1} parent=0
    #allocation2 [shape = 'u8[8192]{0}', space=vmem, size = 0x2000, scoped, tag = 'input window, operand 1']
    #allocation3 [shape = 's32[2]{0}', space=sflag, size = 0x8, scoped, tag = 'scoped memory for tpu_custom_call.1']
    #allocation4 [shape = 's32[2]{0}', space=sflag, size = 0x8, scoped, tag = 'scoped memory for tpu_custom_call.1']
    #allocation5 [shape = 'u8[1024]{0}', space=vmem, size = 0x400, scoped, tag = 'input window, operand 3']
    #allocation6 [shape = 's32[2]{0}', space=sflag, size = 0x8, scoped, tag = 'scoped memory for tpu_custom_call.1']
    #allocation7 [shape = 'u8[512]{0}', space=vmem, size = 0x400, scoped, tag = 'input window, operand 5, single buffered']
    #allocation8 [shape = 'u8[32768]{0}', space=vmem, size = 0x8000, scoped, tag = 'input window, operand 6, single buffered']
    #allocation9 [shape = 's32[1]{0}', space=sflag, size = 0x4, scoped, tag = 'scoped memory for tpu_custom_call.1']
    #allocation10 [shape = 'u8[512]{0}', space=vmem, size = 0x400, scoped, tag = 'input window, operand 7, single buffered']
    #allocation11 [shape = 'u8[512]{0}', space=vmem, size = 0x400, scoped, tag = 'input window, operand 8, single buffered']
    #allocation12 [shape = 's32[1]{0}', space=sflag, size = 0x4, scoped, tag = 'scoped memory for tpu_custom_call.1']
    #allocation13 [shape = 'u8[512]{0}', space=vmem, size = 0x400, scoped, tag = 'input window, operand 9, single buffered']
    #allocation14 [shape = 'u8[8192]{0}', space=vmem, size = 0x2000, scoped, tag = 'output window, operand 0']
    %17 = vsyncpa [#allocation3], 0
    %s18 = scalar_lea.sflag [#allocation3], 1
    %19 = vsyncpa %s18, 0
    %20 = vsyncpa [#allocation6], 0
    %s21 = scalar_lea.sflag [#allocation6], 1
    %22 = vsyncpa %s21, 0
    %23 = vsyncpa [#allocation9], 0
    %24 = vsyncpa [#allocation12], 0
    %25 = vsyncpa [#allocation4], 0
    %s26 = scalar_lea.sflag [#allocation4], 1
    %27 = vsyncpa %s26, 0
    loop: start=0, step=1, limit=4
    $region2: #{tpu_custom_call.1} parent=1 // loop_pre_header
      _
    $region3: #{tpu_custom_call.1} parent=1 // loop_header
      %s29 = sphi 0, %s33
      %p30 = scmp.ge.s32.totalorder %s29, 4
      %s36 = sphi 0, %s48
      %s37 = sphi 0, %s44
      %s38 = sphi 0, %s36
      %s39 = sphi 0, %s37
      %s40 = sphi 0, %s38
      %s41 = sphi 0, %s39
      %s53 = sphi 0, %s55
      %s56 = sphi 0, %s53
      %s57 = sphi 0, %s56
      %s73 = sphi 0, %s57
      %s81 = sphi 0, %s83
      %s84 = sphi 0, %s81
      %s85 = sphi 0, %s84
      %s101 = sphi 0, %s85
      %s107 = sphi 0, %s109
      %s110 = sphi 0, %s107
      %s111 = sphi 0, %s110
      %s127 = sphi 0, %s111
      %s133 = sphi 0, %s135
      %s136 = sphi 0, %s133
      %s137 = sphi 0, %s136
      %s153 = sphi 0, %s137
      %s157 = sphi 0, %s157
      %s159 = sphi 0, %s157
      %s160 = sphi 0, %s159
      %s174 = sphi 0, %s160
      %s178 = sphi 0, %s178
      %s180 = sphi 0, %s178
      %s181 = sphi 0, %s180
      %s195 = sphi 0, %s181
      %s199 = sphi 0, %s199
      %s201 = sphi 0, %s199
      %s202 = sphi 0, %s201
      %s216 = sphi 0, %s202
      %s220 = sphi 0, %s220
      %s222 = sphi 0, %s220
      %s223 = sphi 0, %s222
      %s237 = sphi 0, %s223
      %s241 = sphi 0, %s241
      %s243 = sphi 0, %s241
      %s244 = sphi 0, %s243
      %s258 = sphi 0, %s244
      %s262 = sphi 0, %s262
      %s264 = sphi 0, %s262
      %s265 = sphi 0, %s264
      %s279 = sphi 0, %s265
      %s283 = sphi 0, %s283
      %s285 = sphi 0, %s283
      %s286 = sphi 0, %s285
      %s300 = sphi 0, %s286
      %s304 = sphi 0, %s304
      %s306 = sphi 0, %s304
      %s307 = sphi 0, %s306
      %s321 = sphi 0, %s307
      %s329 = sphi 0, %s331
      %s332 = sphi 0, %s329
      %s333 = sphi 0, %s332
      %s349 = sphi 0, %s333
    $region4: #{tpu_custom_call.1} parent=1 // loop_header_branch
      %32 = sbr.rel (%p30) target = $region8
    $region5: #{tpu_custom_call.1} parent=1 // loop_body
      %s34 = ssub.s32 %s29, 1
      %s35 = ssub.s32 %s29, 2
      %s42 = sadd.s32 1, %s37
      %p43 = scmp.ge.s32.totalorder %s42, 1
      %s44 = scalar_select %p43, 0, %s42
      %s45 = sadd.s32 1, %s36
      %s46 = scalar_select %p43, %s45, %s36
      %p47 = scmp.ge.s32.totalorder %s46, 2
      %s48 = scalar_select %p47, 0, %s46
      %s49 = ssub.s32 %s36, %s48
      %s50 = ssub.s32 %s37, %s44
      %s51 = sor.u32 %s49, %s50
      %p52 = scmp.eq.s32.totalorder %s51, 0
      %s54 = sadd.s32 %s53, 1
      %s55 = scalar_select %p52, %s53, %s54
      %p58 = pneg %p52
      %p59 = scmp.eq.s32.totalorder %s29, 1
      %p60 = por %p58, %p59
      %p61 = scmp.ne.s32.totalorder %s53, %s56
      %p62 = scmp.eq.s32.totalorder %s29, 0
      %p63 = por %p61, %p62
      %p64 = scmp.ne.s32.totalorder %s53, %s56
      %p65 = scmp.eq.s32.totalorder %s34, 1
      %p66 = por %p64, %p65
      %p67 = scmp.ne.s32.totalorder %s56, %s57
      %p68 = scmp.eq.s32.totalorder %s34, 0
      %p69 = por %p67, %p68
      %p70 = scmp.ne.s32.totalorder %s56, %s57
      %p71 = scmp.eq.s32.totalorder %s35, 1
      %p72 = por %p70, %p71
      %p74 = scmp.ne.s32.totalorder %s57, %s73
      %p75 = scmp.eq.s32.totalorder %s35, 0
      %p76 = por %p74, %p75
      %s77 = ssub.s32 %s36, %s48
      %s78 = ssub.s32 %s37, %s44
      %s79 = sor.u32 %s77, %s78
      %p80 = scmp.eq.s32.totalorder %s79, 0
      %s82 = sadd.s32 %s81, 1
      %s83 = scalar_select %p80, %s81, %s82
      %p86 = pneg %p80
      %p87 = scmp.eq.s32.totalorder %s29, 1
      %p88 = por %p86, %p87
      %p89 = scmp.ne.s32.totalorder %s81, %s84
      %p90 = scmp.eq.s32.totalorder %s29, 0
      %p91 = por %p89, %p90
      %p92 = scmp.ne.s32.totalorder %s81, %s84
      %p93 = scmp.eq.s32.totalorder %s34, 1
      %p94 = por %p92, %p93
      %p95 = scmp.ne.s32.totalorder %s84, %s85
      %p96 = scmp.eq.s32.totalorder %s34, 0
      %p97 = por %p95, %p96
      %p98 = scmp.ne.s32.totalorder %s84, %s85
      %p99 = scmp.eq.s32.totalorder %s35, 1
      %p100 = por %p98, %p99
      %p102 = scmp.ne.s32.totalorder %s85, %s101
      %p103 = scmp.eq.s32.totalorder %s35, 0
      %p104 = por %p102, %p103
      %s105 = ssub.s32 %s36, %s48
      %p106 = scmp.eq.s32.totalorder %s105, 0
      %s108 = sadd.s32 %s107, 1
      %s109 = scalar_select %p106, %s107, %s108
      %p112 = pneg %p106
      %p113 = scmp.eq.s32.totalorder %s29, 1
      %p114 = por %p112, %p113
      %p115 = scmp.ne.s32.totalorder %s107, %s110
      %p116 = scmp.eq.s32.totalorder %s29, 0
      %p117 = por %p115, %p116
      %p118 = scmp.ne.s32.totalorder %s107, %s110
      %p119 = scmp.eq.s32.totalorder %s34, 1
      %p120 = por %p118, %p119
      %p121 = scmp.ne.s32.totalorder %s110, %s111
      %p122 = scmp.eq.s32.totalorder %s34, 0
      %p123 = por %p121, %p122
      %p124 = scmp.ne.s32.totalorder %s110, %s111
      %p125 = scmp.eq.s32.totalorder %s35, 1
      %p126 = por %p124, %p125
      %p128 = scmp.ne.s32.totalorder %s111, %s127
      %p129 = scmp.eq.s32.totalorder %s35, 0
      %p130 = por %p128, %p129
      %s131 = ssub.s32 %s36, %s48
      %p132 = scmp.eq.s32.totalorder %s131, 0
      %s134 = sadd.s32 %s133, 1
      %s135 = scalar_select %p132, %s133, %s134
      %p138 = pneg %p132
      %p139 = scmp.eq.s32.totalorder %s29, 1
      %p140 = por %p138, %p139
      %p141 = scmp.ne.s32.totalorder %s133, %s136
      %p142 = scmp.eq.s32.totalorder %s29, 0
      %p143 = por %p141, %p142
      %p144 = scmp.ne.s32.totalorder %s133, %s136
      %p145 = scmp.eq.s32.totalorder %s34, 1
      %p146 = por %p144, %p145
      %p147 = scmp.ne.s32.totalorder %s136, %s137
      %p148 = scmp.eq.s32.totalorder %s34, 0
      %p149 = por %p147, %p148
      %p150 = scmp.ne.s32.totalorder %s136, %s137
      %p151 = scmp.eq.s32.totalorder %s35, 1
      %p152 = por %p150, %p151
      %p154 = scmp.ne.s32.totalorder %s137, %s153
      %p155 = scmp.eq.s32.totalorder %s35, 0
      %p156 = por %p154, %p155
      %s158 = sadd.s32 %s157, 1
      %p161 = scmp.eq.s32.totalorder %s29, 1
      %p162 = scmp.ne.s32.totalorder %s157, %s159
      %p163 = scmp.eq.s32.totalorder %s29, 0
      %p164 = por %p162, %p163
      %p165 = scmp.ne.s32.totalorder %s157, %s159
      %p166 = scmp.eq.s32.totalorder %s34, 1
      %p167 = por %p165, %p166
      %p168 = scmp.ne.s32.totalorder %s159, %s160
      %p169 = scmp.eq.s32.totalorder %s34, 0
      %p170 = por %p168, %p169
      %p171 = scmp.ne.s32.totalorder %s159, %s160
      %p172 = scmp.eq.s32.totalorder %s35, 1
      %p173 = por %p171, %p172
      %p175 = scmp.ne.s32.totalorder %s160, %s174
      %p176 = scmp.eq.s32.totalorder %s35, 0
      %p177 = por %p175, %p176
      %s179 = sadd.s32 %s178, 1
      %p182 = scmp.eq.s32.totalorder %s29, 1
      %p183 = scmp.ne.s32.totalorder %s178, %s180
      %p184 = scmp.eq.s32.totalorder %s29, 0
      %p185 = por %p183, %p184
      %p186 = scmp.ne.s32.totalorder %s178, %s180
      %p187 = scmp.eq.s32.totalorder %s34, 1
      %p188 = por %p186, %p187
      %p189 = scmp.ne.s32.totalorder %s180, %s181
      %p190 = scmp.eq.s32.totalorder %s34, 0
      %p191 = por %p189, %p190
      %p192 = scmp.ne.s32.totalorder %s180, %s181
      %p193 = scmp.eq.s32.totalorder %s35, 1
      %p194 = por %p192, %p193
      %p196 = scmp.ne.s32.totalorder %s181, %s195
      %p197 = scmp.eq.s32.totalorder %s35, 0
      %p198 = por %p196, %p197
      %s200 = sadd.s32 %s199, 1
      %p203 = scmp.eq.s32.totalorder %s29, 1
      %p204 = scmp.ne.s32.totalorder %s199, %s201
      %p205 = scmp.eq.s32.totalorder %s29, 0
      %p206 = por %p204, %p205
      %p207 = scmp.ne.s32.totalorder %s199, %s201
      %p208 = scmp.eq.s32.totalorder %s34, 1
      %p209 = por %p207, %p208
      %p210 = scmp.ne.s32.totalorder %s201, %s202
      %p211 = scmp.eq.s32.totalorder %s34, 0
      %p212 = por %p210, %p211
      %p213 = scmp.ne.s32.totalorder %s201, %s202
      %p214 = scmp.eq.s32.totalorder %s35, 1
      %p215 = por %p213, %p214
      %p217 = scmp.ne.s32.totalorder %s202, %s216
      %p218 = scmp.eq.s32.totalorder %s35, 0
      %p219 = por %p217, %p218
      %s221 = sadd.s32 %s220, 1
      %p224 = scmp.eq.s32.totalorder %s29, 1
      %p225 = scmp.ne.s32.totalorder %s220, %s222
      %p226 = scmp.eq.s32.totalorder %s29, 0
      %p227 = por %p225, %p226
      %p228 = scmp.ne.s32.totalorder %s220, %s222
      %p229 = scmp.eq.s32.totalorder %s34, 1
      %p230 = por %p228, %p229
      %p231 = scmp.ne.s32.totalorder %s222, %s223
      %p232 = scmp.eq.s32.totalorder %s34, 0
      %p233 = por %p231, %p232
      %p234 = scmp.ne.s32.totalorder %s222, %s223
      %p235 = scmp.eq.s32.totalorder %s35, 1
      %p236 = por %p234, %p235
      %p238 = scmp.ne.s32.totalorder %s223, %s237
      %p239 = scmp.eq.s32.totalorder %s35, 0
      %p240 = por %p238, %p239
      %s242 = sadd.s32 %s241, 1
      %p245 = scmp.eq.s32.totalorder %s29, 1
      %p246 = scmp.ne.s32.totalorder %s241, %s243
      %p247 = scmp.eq.s32.totalorder %s29, 0
      %p248 = por %p246, %p247
      %p249 = scmp.ne.s32.totalorder %s241, %s243
      %p250 = scmp.eq.s32.totalorder %s34, 1
      %p251 = por %p249, %p250
      %p252 = scmp.ne.s32.totalorder %s243, %s244
      %p253 = scmp.eq.s32.totalorder %s34, 0
      %p254 = por %p252, %p253
      %p255 = scmp.ne.s32.totalorder %s243, %s244
      %p256 = scmp.eq.s32.totalorder %s35, 1
      %p257 = por %p255, %p256
      %p259 = scmp.ne.s32.totalorder %s244, %s258
      %p260 = scmp.eq.s32.totalorder %s35, 0
      %p261 = por %p259, %p260
      %s263 = sadd.s32 %s262, 1
      %p266 = scmp.eq.s32.totalorder %s29, 1
      %p267 = scmp.ne.s32.totalorder %s262, %s264
      %p268 = scmp.eq.s32.totalorder %s29, 0
      %p269 = por %p267, %p268
      %p270 = scmp.ne.s32.totalorder %s262, %s264
      %p271 = scmp.eq.s32.totalorder %s34, 1
      %p272 = por %p270, %p271
      %p273 = scmp.ne.s32.totalorder %s264, %s265
      %p274 = scmp.eq.s32.totalorder %s34, 0
      %p275 = por %p273, %p274
      %p276 = scmp.ne.s32.totalorder %s264, %s265
      %p277 = scmp.eq.s32.totalorder %s35, 1
      %p278 = por %p276, %p277
      %p280 = scmp.ne.s32.totalorder %s265, %s279
      %p281 = scmp.eq.s32.totalorder %s35, 0
      %p282 = por %p280, %p281
      %s284 = sadd.s32 %s283, 1
      %p287 = scmp.eq.s32.totalorder %s29, 1
      %p288 = scmp.ne.s32.totalorder %s283, %s285
      %p289 = scmp.eq.s32.totalorder %s29, 0
      %p290 = por %p288, %p289
      %p291 = scmp.ne.s32.totalorder %s283, %s285
      %p292 = scmp.eq.s32.totalorder %s34, 1
      %p293 = por %p291, %p292
      %p294 = scmp.ne.s32.totalorder %s285, %s286
      %p295 = scmp.eq.s32.totalorder %s34, 0
      %p296 = por %p294, %p295
      %p297 = scmp.ne.s32.totalorder %s285, %s286
      %p298 = scmp.eq.s32.totalorder %s35, 1
      %p299 = por %p297, %p298
      %p301 = scmp.ne.s32.totalorder %s286, %s300
      %p302 = scmp.eq.s32.totalorder %s35, 0
      %p303 = por %p301, %p302
      %s305 = sadd.s32 %s304, 1
      %p308 = scmp.eq.s32.totalorder %s29, 1
      %p309 = scmp.ne.s32.totalorder %s304, %s306
      %p310 = scmp.eq.s32.totalorder %s29, 0
      %p311 = por %p309, %p310
      %p312 = scmp.ne.s32.totalorder %s304, %s306
      %p313 = scmp.eq.s32.totalorder %s34, 1
      %p314 = por %p312, %p313
      %p315 = scmp.ne.s32.totalorder %s306, %s307
      %p316 = scmp.eq.s32.totalorder %s34, 0
      %p317 = por %p315, %p316
      %p318 = scmp.ne.s32.totalorder %s306, %s307
      %p319 = scmp.eq.s32.totalorder %s35, 1
      %p320 = por %p318, %p319
      %p322 = scmp.ne.s32.totalorder %s307, %s321
      %p323 = scmp.eq.s32.totalorder %s35, 0
      %p324 = por %p322, %p323
      %s325 = ssub.s32 %s36, %s48
      %s326 = ssub.s32 %s37, %s44
      %s327 = sor.u32 %s325, %s326
      %p328 = scmp.eq.s32.totalorder %s327, 0
      %s330 = sadd.s32 %s329, 1
      %s331 = scalar_select %p328, %s329, %s330
      %p334 = pneg %p328
      %p335 = scmp.eq.s32.totalorder %s29, 1
      %p336 = por %p334, %p335
      %p337 = scmp.ne.s32.totalorder %s329, %s332
      %p338 = scmp.eq.s32.totalorder %s29, 0
      %p339 = por %p337, %p338
      %p340 = scmp.ne.s32.totalorder %s329, %s332
      %p341 = scmp.eq.s32.totalorder %s34, 1
      %p342 = por %p340, %p341
      %p343 = scmp.ne.s32.totalorder %s332, %s333
      %p344 = scmp.eq.s32.totalorder %s34, 0
      %p345 = por %p343, %p344
      %p346 = scmp.ne.s32.totalorder %s332, %s333
      %p347 = scmp.eq.s32.totalorder %s35, 1
      %p348 = por %p346, %p347
      %p350 = scmp.ne.s32.totalorder %s333, %s349
      %p351 = scmp.eq.s32.totalorder %s35, 0
      %p352 = por %p350, %p351
      %p353 = scmp.le.s32.totalorder 1, %s29
      %p354 = scmp.lt.s32.totalorder %s29, 3
      %p355 = pnand %p353, %p354
      %p356 = pneg %p355
      // Predicated region
      $region9: #{tpu_custom_call.1} parent=5 // pred_check
        _
      $region10: #{tpu_custom_call.1} parent=5 // pred_check_branch
        %358 = sbr.rel (%p355) target = $region12
      $region11: #{tpu_custom_call.1} parent=5 // pred_region
        %s359 = ssub.s32 %s29, 1
        // Predicated region
        $region13: #{tpu_custom_call.1} parent=11 // pred_check
          %p360 = pneg %p170
        $region14: #{tpu_custom_call.1} parent=11 // pred_check_branch
          %362 = sbr.rel (%p360) target = $region16
        $region15: #{tpu_custom_call.1} parent=11 // pred_region
          _
        $region16: #{tpu_custom_call.1} parent=11 // pred_fallthru
          _
        // Predicated region
        $region17: #{tpu_custom_call.1} parent=11 // pred_check
          %p363 = pneg %p191
        $region18: #{tpu_custom_call.1} parent=11 // pred_check_branch
          %365 = sbr.rel (%p363) target = $region20
        $region19: #{tpu_custom_call.1} parent=11 // pred_region
          %s367 = ssub.s32 16, 16
          %368 = vsyncadd [#allocation6], %s367
          %s370 = sshll.u32 [#allocation7], 4
          %s371 = int_to_ptr.vmem [resolvable:$true] %s370
          %373 = dma.hbm_to_vmem [thread:$0]  %s5, 16, %s371, [#allocation6]
        $region20: #{tpu_custom_call.1} parent=11 // pred_fallthru
          _
        // Predicated region
        $region21: #{tpu_custom_call.1} parent=11 // pred_check
          %p374 = pneg %p212
        $region22: #{tpu_custom_call.1} parent=11 // pred_check_branch
          %376 = sbr.rel (%p374) target = $region24
        $region23: #{tpu_custom_call.1} parent=11 // pred_region
          %s378 = ssub.s32 1024, 1024
          %379 = vsyncadd [#allocation9], %s378
          %s380 = sshll.u32 [#allocation8], 4
          %s381 = int_to_ptr.vmem [resolvable:$true] %s380
          %386 = dma.hbm_to_vmem [thread:$0]  %s6, 1024, %s381, [#allocation9], 128, 128, 8
        $region24: #{tpu_custom_call.1} parent=11 // pred_fallthru
          _
        // Predicated region
        $region25: #{tpu_custom_call.1} parent=11 // pred_check
          %p387 = pneg %p233
        $region26: #{tpu_custom_call.1} parent=11 // pred_check_branch
          %389 = sbr.rel (%p387) target = $region28
        $region27: #{tpu_custom_call.1} parent=11 // pred_region
          %s391 = ssub.s32 16, 16
          %392 = vsyncadd [#allocation9], %s391
          %s394 = sshll.u32 [#allocation10], 4
          %s395 = int_to_ptr.vmem [resolvable:$true] %s394
          %397 = dma.hbm_to_vmem [thread:$0]  %s7, 16, %s395, [#allocation9]
        $region28: #{tpu_custom_call.1} parent=11 // pred_fallthru
          _
        // Predicated region
        $region29: #{tpu_custom_call.1} parent=11 // pred_check
          %p398 = pneg %p254
        $region30: #{tpu_custom_call.1} parent=11 // pred_check_branch
          %400 = sbr.rel (%p398) target = $region32
        $region31: #{tpu_custom_call.1} parent=11 // pred_region
          %s402 = ssub.s32 16, 16
          %403 = vsyncadd [#allocation12], %s402
          %s405 = sshll.u32 [#allocation11], 4
          %s406 = int_to_ptr.vmem [resolvable:$true] %s405
          %408 = dma.hbm_to_vmem [thread:$0]  %s8, 16, %s406, [#allocation12]
        $region32: #{tpu_custom_call.1} parent=11 // pred_fallthru
          _
        // Predicated region
        $region33: #{tpu_custom_call.1} parent=11 // pred_check
          %p409 = pneg %p275
        $region34: #{tpu_custom_call.1} parent=11 // pred_check_branch
          %411 = sbr.rel (%p409) target = $region36
        $region35: #{tpu_custom_call.1} parent=11 // pred_region
          %s413 = ssub.s32 16, 16
          %414 = vsyncadd [#allocation12], %s413
          %s416 = sshll.u32 [#allocation13], 4
          %s417 = int_to_ptr.vmem [resolvable:$true] %s416
          %419 = dma.hbm_to_vmem [thread:$0]  %s9, 16, %s417, [#allocation12]
        $region36: #{tpu_custom_call.1} parent=11 // pred_fallthru
          _
        // Predicated region
        $region37: #{tpu_custom_call.1} parent=11 // pred_check
          %p420 = pneg %p296
        $region38: #{tpu_custom_call.1} parent=11 // pred_check_branch
          %422 = sbr.rel (%p420) target = $region40
        $region39: #{tpu_custom_call.1} parent=11 // pred_region
          _
        $region40: #{tpu_custom_call.1} parent=11 // pred_fallthru
          _
        // Predicated region
        $region41: #{tpu_custom_call.1} parent=11 // pred_check
          %p423 = pneg %p317
        $region42: #{tpu_custom_call.1} parent=11 // pred_check_branch
          %425 = sbr.rel (%p423) target = $region44
        $region43: #{tpu_custom_call.1} parent=11 // pred_region
          _
        $region44: #{tpu_custom_call.1} parent=11 // pred_fallthru
          _
      $region12: #{tpu_custom_call.1} parent=5 // pred_fallthru
        _
      %p426 = scmp.lt.s32.totalorder %s29, 2
      // Predicated region
      $region45: #{tpu_custom_call.1} parent=5 // pred_check
        %p427 = pneg %p426
      $region46: #{tpu_custom_call.1} parent=5 // pred_check_branch
        %429 = sbr.rel (%p427) target = $region48
      $region47: #{tpu_custom_call.1} parent=5 // pred_region
        // Predicated region
        $region49: #{tpu_custom_call.1} parent=47 // pred_check
          %p430 = pneg %p63
        $region50: #{tpu_custom_call.1} parent=47 // pred_check_branch
          %432 = sbr.rel (%p430) target = $region52
        $region51: #{tpu_custom_call.1} parent=47 // pred_region
          %p433 = scmp.lt.s32.totalorder %s36, 1
          %s434 = scalar_select %p433, %s36, 1
          %p435 = scmp.lt.s32.totalorder %s37, 0
          %s436 = scalar_select %p435, %s37, 0
          %s437 = sadd.s32 %s436, %s434
          %s438 = smul.addr %s437, 8
          %s439 = scalar_lea.vmem %s0, %s438
        $region52: #{tpu_custom_call.1} parent=47 // pred_fallthru
          _
        // Predicated region
        $region53: #{tpu_custom_call.1} parent=47 // pred_check
          %p440 = pneg %p91
        $region54: #{tpu_custom_call.1} parent=47 // pred_check_branch
          %442 = sbr.rel (%p440) target = $region56
        $region55: #{tpu_custom_call.1} parent=47 // pred_region
          %s443 = sand.u32 %s81, 1
          %s444 = scalar_lea.sflag [#allocation3], %s443
          %s445 = sand.u32 %s81, 1
          %s446 = smul.addr %s445, 8
          %s447 = scalar_lea.vmem [#allocation2], %s446
          %s449 = ssub.s32 128, 128
          %450 = vsyncadd %s444, %s449
          %s451 = sadd.s32 %s37, %s36
          %s452 = smul.addr %s451, 128
          %s453 = scalar_lea.hbm %s1, %s452
          %s455 = sshll.u32 %s447, 4
          %s456 = int_to_ptr.vmem [resolvable:$true] %s455
          %458 = dma.hbm_to_vmem [thread:$0]  %s453, 128, %s456, %s444
        $region56: #{tpu_custom_call.1} parent=47 // pred_fallthru
          _
        // Predicated region
        $region57: #{tpu_custom_call.1} parent=47 // pred_check
          %p459 = pneg %p117
        $region58: #{tpu_custom_call.1} parent=47 // pred_check_branch
          %461 = sbr.rel (%p459) target = $region60
        $region59: #{tpu_custom_call.1} parent=47 // pred_region
          %p462 = scmp.lt.s32.totalorder %s36, 1
          %s463 = scalar_select %p462, %s36, 1
          %s464 = scalar_lea.vmem %s2, %s463
        $region60: #{tpu_custom_call.1} parent=47 // pred_fallthru
          _
        // Predicated region
        $region61: #{tpu_custom_call.1} parent=47 // pred_check
          %p465 = pneg %p143
        $region62: #{tpu_custom_call.1} parent=47 // pred_check_branch
          %467 = sbr.rel (%p465) target = $region64
        $region63: #{tpu_custom_call.1} parent=47 // pred_region
          %s468 = sand.u32 %s29, 1
          %s469 = scalar_lea.sflag [#allocation6], %s468
          %s470 = sand.u32 %s133, 1
          %s471 = scalar_lea.vmem [#allocation5], %s470
          %s473 = ssub.s32 16, 16
          %474 = vsyncadd %s469, %s473
          %s475 = smul.addr %s36, 16
          %s476 = scalar_lea.hbm %s3, %s475
          %s478 = sshll.u32 %s471, 4
          %s479 = int_to_ptr.vmem [resolvable:$true] %s478
          %481 = dma.hbm_to_vmem [thread:$0]  %s476, 16, %s479, %s469
        $region64: #{tpu_custom_call.1} parent=47 // pred_fallthru
          _
      $region48: #{tpu_custom_call.1} parent=5 // pred_fallthru
        _
      %p482 = scmp.le.s32.totalorder 1, %s29
      %p483 = scmp.lt.s32.totalorder %s29, 3
      %p484 = pnand %p482, %p483
      %p485 = pneg %p484
      // Predicated region
      $region65: #{tpu_custom_call.1} parent=5 // pred_check
        _
      $region66: #{tpu_custom_call.1} parent=5 // pred_check_branch
        %487 = sbr.rel (%p484) target = $region68
      $region67: #{tpu_custom_call.1} parent=5 // pred_region
        %s488 = ssub.s32 %s29, 1
        %s489 = sand.u32 %s84, 1
        %s490 = scalar_lea.sflag [#allocation3], %s489
        %s491 = sand.u32 %s84, 1
        %s492 = smul.addr %s491, 8
        %s493 = scalar_lea.vmem [#allocation2], %s492
        // Predicated region
        $region69: #{tpu_custom_call.1} parent=67 // pred_check
          %p494 = pneg %p97
        $region70: #{tpu_custom_call.1} parent=67 // pred_check_branch
          %496 = sbr.rel (%p494) target = $region72
        $region71: #{tpu_custom_call.1} parent=67 // pred_region
          %497 = dma.done %s490, 128
        $region72: #{tpu_custom_call.1} parent=67 // pred_fallthru
          _
        %s498 = sand.u32 %s34, 1
        %s499 = scalar_lea.sflag [#allocation6], %s498
        %s500 = sand.u32 %s136, 1
        %s501 = scalar_lea.vmem [#allocation5], %s500
        // Predicated region
        $region73: #{tpu_custom_call.1} parent=67 // pred_check
          %p502 = pneg %p149
        $region74: #{tpu_custom_call.1} parent=67 // pred_check_branch
          %504 = sbr.rel (%p502) target = $region76
        $region75: #{tpu_custom_call.1} parent=67 // pred_region
          %505 = dma.done %s499, 16
        $region76: #{tpu_custom_call.1} parent=67 // pred_fallthru
          _
        // Predicated region
        $region77: #{tpu_custom_call.1} parent=67 // pred_check
          %p506 = pneg %p191
        $region78: #{tpu_custom_call.1} parent=67 // pred_check_branch
          %508 = sbr.rel (%p506) target = $region80
        $region79: #{tpu_custom_call.1} parent=67 // pred_region
          %509 = dma.done [#allocation6], 16
        $region80: #{tpu_custom_call.1} parent=67 // pred_fallthru
          _
        // Predicated region
        $region81: #{tpu_custom_call.1} parent=67 // pred_check
          %p510 = pneg %p212
        $region82: #{tpu_custom_call.1} parent=67 // pred_check_branch
          %512 = sbr.rel (%p510) target = $region84
        $region83: #{tpu_custom_call.1} parent=67 // pred_region
          %513 = dma.done [#allocation9], 1024
        $region84: #{tpu_custom_call.1} parent=67 // pred_fallthru
          _
        // Predicated region
        $region85: #{tpu_custom_call.1} parent=67 // pred_check
          %p514 = pneg %p233
        $region86: #{tpu_custom_call.1} parent=67 // pred_check_branch
          %516 = sbr.rel (%p514) target = $region88
        $region87: #{tpu_custom_call.1} parent=67 // pred_region
          %517 = dma.done [#allocation9], 16
        $region88: #{tpu_custom_call.1} parent=67 // pred_fallthru
          _
        // Predicated region
        $region89: #{tpu_custom_call.1} parent=67 // pred_check
          %p518 = pneg %p254
        $region90: #{tpu_custom_call.1} parent=67 // pred_check_branch
          %520 = sbr.rel (%p518) target = $region92
        $region91: #{tpu_custom_call.1} parent=67 // pred_region
          %521 = dma.done [#allocation12], 16
        $region92: #{tpu_custom_call.1} parent=67 // pred_fallthru
          _
        // Predicated region
        $region93: #{tpu_custom_call.1} parent=67 // pred_check
          %p522 = pneg %p275
        $region94: #{tpu_custom_call.1} parent=67 // pred_check_branch
          %524 = sbr.rel (%p522) target = $region96
        $region95: #{tpu_custom_call.1} parent=67 // pred_region
          %525 = dma.done [#allocation12], 16
        $region96: #{tpu_custom_call.1} parent=67 // pred_fallthru
          _
        %p526 = scmp.lt.s32.totalorder %s38, 1
        %s527 = scalar_select %p526, %s38, 1
        %p528 = scmp.lt.s32.totalorder %s39, 0
        %s529 = scalar_select %p528, %s39, 0
        %s530 = sadd.s32 %s529, %s527
        %s531 = smul.addr %s530, 8
        %s532 = scalar_lea.vmem %s0, %s531
        %p533 = pneg %p69
        %p534 = pneg %p66
        %s535 = sand.u32 %s84, 1
        %s536 = scalar_lea.sflag [#allocation3], %s535
        %s537 = sand.u32 %s84, 1
        %s538 = smul.addr %s537, 8
        %s539 = scalar_lea.vmem [#allocation2], %s538
        %p540 = pneg %p97
        %p541 = pneg %p94
        %p542 = scmp.lt.s32.totalorder %s38, 1
        %s543 = scalar_select %p542, %s38, 1
        %s544 = scalar_lea.vmem %s2, %s543
        %p545 = pneg %p123
        %p546 = pneg %p120
        %s547 = sand.u32 %s34, 1
        %s548 = scalar_lea.sflag [#allocation6], %s547
        %s549 = sand.u32 %s136, 1
        %s550 = scalar_lea.vmem [#allocation5], %s549
        %p551 = pneg %p149
        %p552 = pneg %p146
        %p553 = pneg %p170
        %p554 = pneg %p167
        %p555 = pneg %p191
        %p556 = pneg %p188
        %p557 = pneg %p212
        %p558 = pneg %p209
        %p559 = pneg %p233
        %p560 = pneg %p230
        %p561 = pneg %p254
        %p562 = pneg %p251
        %p563 = pneg %p275
        %p564 = pneg %p272
        %p565 = pneg %p296
        %p566 = pneg %p293
        %p567 = pneg %p317
        %p568 = pneg %p314
        %p569 = pneg %p345
        %p570 = pneg %p342
        %s571 = sand.u32 %s332, 1
        %s572 = scalar_lea.sflag [#allocation4], %s571
        %s573 = sand.u32 %s332, 1
        %s574 = smul.addr %s573, 8
        %s575 = scalar_lea.vmem [#allocation14], %s574
        %p576 = scmp.lt.s32.totalorder %s38, 1
        %s577 = scalar_select %p576, %s38, 1
        %p578 = scmp.lt.s32.totalorder %s39, 0
        %s579 = scalar_select %p578, %s39, 0
        %s580 = sadd.s32 %s579, %s577
        %s581 = smul.addr %s580, 8
        %s582 = scalar_lea.vmem %s0, %s581
        %p583 = scmp.lt.s32.totalorder %s38, 1
        %s584 = scalar_select %p583, %s38, 1
        %s585 = scalar_lea.vmem %s2, %s584
        %v586 = vld [vmem:[%s582] sm:$0xff]
        %v587 = vld [vmem:[%s493] sm:$0xff]
        %589 = vrot.lane.b32.xlu0 %v587, 32
        %v590 = vpop.permute.xlu0 %589
        %vm592 = vcmask 261120
        %v593 = vsel %vm592, %v586, %v590
        %v594 = vld [vmem:[%s585] sm:$0x1]
        %v595 = vld [vmem:[%s501] sm:$0x1]
        %v596 = vld [vmem:[%s4] sm:$0xff]
        %v597 = vld [vmem:[%s4 + $0x8] sm:$0xff]
        %v598 = vld [vmem:[%s4 + $0x10] sm:$0xff]
        %v599 = vld [vmem:[%s4 + $0x18] sm:$0xff]
        %v600 = vld [vmem:[%s4 + $0x20] sm:$0xff]
        %v601 = vld [vmem:[%s4 + $0x28] sm:$0xff]
        %v602 = vld [vmem:[%s4 + $0x30] sm:$0xff]
        %v603 = vld [vmem:[%s4 + $0x38] sm:$0xff]
        %v604 = vld [vmem:[#allocation7] sm:$0x1]
        %v605 = vld [vmem:[#allocation8] sm:$0xff]
        %v606 = vld [vmem:[#allocation8 + $0x8] sm:$0xff]
        %v607 = vld [vmem:[#allocation8 + $0x10] sm:$0xff]
        %v608 = vld [vmem:[#allocation8 + $0x18] sm:$0xff]
        %v609 = vld [vmem:[#allocation8 + $0x20] sm:$0xff]
        %v610 = vld [vmem:[#allocation8 + $0x28] sm:$0xff]
        %v611 = vld [vmem:[#allocation8 + $0x30] sm:$0xff]
        %v612 = vld [vmem:[#allocation8 + $0x38] sm:$0xff]
        %v613 = vld [vmem:[#allocation10] sm:$0x1]
        %v614 = vld [vmem:[#allocation11] sm:$0x1]
        %v615 = vld [vmem:[#allocation13] sm:$0x1]
        %v616 = vmul.f32 %v594, %v614
        %v617 = vmul.f32 %v594, %v615
        %v618 = vadd.f32 %v617, %v595
        %v620 = vlaneseq
        %v621 = vshrl.u32 %v620, 7
        %v622 = vsub.s32 0, %v621
        %v623 = vrot.slane %v604, %v622
        %vm625 = vcmask 523264
        %v627 = vsel %vm625, %v593, 0
        %629 = vmatprep.subr.mxu0 0.0
        %630 = vmatpush1.msra.mxu0 0.0
        %631 = vmatprep.subr.mxu0 0.0
        %632 = vmatpush1.msra.mxu0 0.0
        %633 = vmatprep.subr.mxu0 0.0
        %634 = vmatpush1.msra.mxu0 0.0
        %635 = vmatprep.subr.mxu0 0.0
        %636 = vmatpush1.msra.mxu0 0.0
        %637 = vmatprep.subr.mxu0 0.0
        %638 = vmatpush1.msra.mxu0 0.0
        %639 = vmatprep.subr.mxu0 0.0
        %640 = vmatpush1.msra.mxu0 0.0
        %641 = vmatprep.subr.mxu0 0.0
        %642 = vmatpush1.msra.mxu0 0.0
        %643 = vmatprep.subr.mxu0 0.0
        %644 = vmatpush1.msra.mxu0 0.0
        %645 = vmatprep.subr.mxu0 0.0
        %646 = vmatpush1.msra.mxu0 %v603
        %647 = vmatprep.subr.mxu0 0.0
        %648 = vmatpush1.msra.mxu0 %v602
        %649 = vmatprep.subr.mxu0 0.0
        %650 = vmatpush1.msra.mxu0 %v601
        %651 = vmatprep.subr.mxu0 0.0
        %652 = vmatpush1.msra.mxu0 %v600
        %653 = vmatprep.subr.mxu0 0.0
        %654 = vmatpush1.msra.mxu0 %v599
        %655 = vmatprep.subr.mxu0 0.0
        %656 = vmatpush1.msra.mxu0 %v598
        %657 = vmatprep.subr.mxu0 0.0
        %658 = vmatpush1.msra.mxu0 %v597
        %659 = vmatprep.subr.mxu0 0.0
        %660 = vmatpush1.msra.mxu0 %v596
        %661 = vmatprep.subr.mxu0 0.0
        %662 = vmatpush2.msra.mxu0 0.0
        %663 = vmatprep.subr.mxu0 0.0
        %664 = vmatpush2.msra.mxu0 0.0
        %665 = vmatprep.subr.mxu0 0.0
        %666 = vmatpush2.msra.mxu0 0.0
        %667 = vmatprep.subr.mxu0 0.0
        %668 = vmatpush2.msra.mxu0 0.0
        %669 = vmatprep.subr.mxu0 0.0
        %670 = vmatpush2.msra.mxu0 0.0
        %671 = vmatprep.subr.mxu0 0.0
        %672 = vmatpush2.msra.mxu0 0.0
        %673 = vmatprep.subr.mxu0 0.0
        %674 = vmatpush2.msra.mxu0 0.0
        %675 = vmatprep.subr.mxu0 0.0
        %676 = vmatpush2.msra.mxu0 0.0
        %677 = vmatprep.subr.mxu0 0.0
        %678 = vmatpush2.msra.mxu0 0.0
        %679 = vmatprep.subr.mxu0 0.0
        %680 = vmatpush2.msra.mxu0 0.0
        %681 = vmatprep.subr.mxu0 0.0
        %682 = vmatpush2.msra.mxu0 0.0
        %683 = vmatprep.subr.mxu0 0.0
        %684 = vmatpush2.msra.mxu0 0.0
        %685 = vmatprep.subr.mxu0 0.0
        %686 = vmatpush2.msra.mxu0 0.0
        %687 = vmatprep.subr.mxu0 0.0
        %688 = vmatpush2.msra.mxu0 0.0
        %689 = vmatprep.subr.mxu0 0.0
        %690 = vmatpush2.msra.mxu0 0.0
        %691 = vmatprep.subr.mxu0 0.0
        %692 = vmatpush2.msra.mxu0 0.0
        %693 = vmatprep.mubr.f32.mxu0 0.0
        %694 = vmatmul.mubr.f32.gmra.mxu0 %v627
        %v695 = vpop.f32.mrf.mxu0
        %v696 = vadd.f32 %v623, %v695
        %v697 = vpop.f32.mrf.mxu0
        %698 = vdwg.mxu0
        %v699 = vmul.f32 %v696, 0.5
        %v700 = vrcp.pop 1.4142135
        %v701 = vmul.f32 %v696, %v700
        %v702 = verf.f32.pop %v701
        %v703 = vadd.f32 %v702, 1.0
        %v704 = vmul.f32 %v699, %v703
        %v706 = vlaneseq
        %v707 = vshrl.u32 %v706, 7
        %v708 = vsub.s32 0, %v707
        %v709 = vrot.slane %v613, %v708
        %v712 = vsel %vm625, %v704, 0
        %714 = vmatprep.subr.mxu0 0.0
        %715 = vmatpush1.msra.mxu0 0.0
        %716 = vmatprep.subr.mxu0 0.0
        %717 = vmatpush1.msra.mxu0 0.0
        %718 = vmatprep.subr.mxu0 0.0
        %719 = vmatpush1.msra.mxu0 0.0
        %720 = vmatprep.subr.mxu0 0.0
        %721 = vmatpush1.msra.mxu0 0.0
        %722 = vmatprep.subr.mxu0 0.0
        %723 = vmatpush1.msra.mxu0 0.0
        %724 = vmatprep.subr.mxu0 0.0
        %725 = vmatpush1.msra.mxu0 0.0
        %726 = vmatprep.subr.mxu0 0.0
        %727 = vmatpush1.msra.mxu0 0.0
        %728 = vmatprep.subr.mxu0 0.0
        %729 = vmatpush1.msra.mxu0 0.0
        %730 = vmatprep.subr.mxu0 0.0
        %731 = vmatpush1.msra.mxu0 %v612
        %732 = vmatprep.subr.mxu0 0.0
        %733 = vmatpush1.msra.mxu0 %v611
        %734 = vmatprep.subr.mxu0 0.0
        %735 = vmatpush1.msra.mxu0 %v610
        %736 = vmatprep.subr.mxu0 0.0
        %737 = vmatpush1.msra.mxu0 %v609
        %738 = vmatprep.subr.mxu0 0.0
        %739 = vmatpush1.msra.mxu0 %v608
        %740 = vmatprep.subr.mxu0 0.0
        %741 = vmatpush1.msra.mxu0 %v607
        %742 = vmatprep.subr.mxu0 0.0
        %743 = vmatpush1.msra.mxu0 %v606
        %744 = vmatprep.subr.mxu0 0.0
        %745 = vmatpush1.msra.mxu0 %v605
        %746 = vmatprep.subr.mxu0 0.0
        %747 = vmatpush2.msra.mxu0 0.0
        %748 = vmatprep.subr.mxu0 0.0
        %749 = vmatpush2.msra.mxu0 0.0
        %750 = vmatprep.subr.mxu0 0.0
        %751 = vmatpush2.msra.mxu0 0.0
        %752 = vmatprep.subr.mxu0 0.0
        %753 = vmatpush2.msra.mxu0 0.0
        %754 = vmatprep.subr.mxu0 0.0
        %755 = vmatpush2.msra.mxu0 0.0
        %756 = vmatprep.subr.mxu0 0.0
        %757 = vmatpush2.msra.mxu0 0.0
        %758 = vmatprep.subr.mxu0 0.0
        %759 = vmatpush2.msra.mxu0 0.0
        %760 = vmatprep.subr.mxu0 0.0
        %761 = vmatpush2.msra.mxu0 0.0
        %762 = vmatprep.subr.mxu0 0.0
        %763 = vmatpush2.msra.mxu0 0.0
        %764 = vmatprep.subr.mxu0 0.0
        %765 = vmatpush2.msra.mxu0 0.0
        %766 = vmatprep.subr.mxu0 0.0
        %767 = vmatpush2.msra.mxu0 0.0
        %768 = vmatprep.subr.mxu0 0.0
        %769 = vmatpush2.msra.mxu0 0.0
        %770 = vmatprep.subr.mxu0 0.0
        %771 = vmatpush2.msra.mxu0 0.0
        %772 = vmatprep.subr.mxu0 0.0
        %773 = vmatpush2.msra.mxu0 0.0
        %774 = vmatprep.subr.mxu0 0.0
        %775 = vmatpush2.msra.mxu0 0.0
        %776 = vmatprep.subr.mxu0 0.0
        %777 = vmatpush2.msra.mxu0 0.0
        %778 = vmatprep.mubr.f32.mxu0 0.0
        %779 = vmatmul.mubr.f32.gmra.mxu0 %v712
        %v780 = vpop.f32.mrf.mxu0
        %v781 = vadd.f32 %v709, %v780
        %v782 = vpop.f32.mrf.mxu0
        %783 = vdwg.mxu0
        %v784 = vmul.f32 %v781, 0.5
        %v785 = vmul.f32 %v781, %v700
        %v786 = verf.f32.pop %v785
        %v787 = vadd.f32 %v786, 1.0
        %v788 = vmul.f32 %v784, %v787
        %v789 = vadd.f32 %v593, %v788
        %v790 = vsel %vm625, %v789, 0.0
        %791 = vadd.xlane.f32.xlu0 %v790
        %v792 = vpop.xlane.xlu0 %791
        %v793 = vrcp.pop 64.0
        %v794 = vmul.f32 %v792, %v793
        %v795 = vsub.f32 %v789, %v794
        %v796 = vmul.f32 %v795, %v795
        %v797 = vsel %vm625, %v796, 0.0
        %798 = vadd.xlane.f32.xlu0 %v797
        %v799 = vpop.xlane.xlu0 %798
        %v800 = vmul.f32 %v799, %v793
        %v801 = vadd.f32 %v800, 1e-05
        %v802 = vrsqrt.pop %v801
        %v803 = vmul.f32 %v795, %v802
        %v805 = vlaneseq
        %v806 = vshrl.u32 %v805, 7
        %v807 = vsub.s32 0, %v806
        %v808 = vrot.slane %v616, %v807
        %v810 = vmul.f32 %v808, %v803
        %v812 = vlaneseq
        %v813 = vshrl.u32 %v812, 7
        %v814 = vsub.s32 0, %v813
        %v815 = vrot.slane %v618, %v814
        %v817 = vadd.f32 %v810, %v815
        %v819 = vsel %vm625, %v817, 0
        %821 = vmatprep.subr.mxu0 0.0
        %822 = vmatpush1.msra.mxu0 0.0
        %823 = vmatprep.subr.mxu0 0.0
        %824 = vmatpush1.msra.mxu0 0.0
        %825 = vmatprep.subr.mxu0 0.0
        %826 = vmatpush1.msra.mxu0 0.0
        %827 = vmatprep.subr.mxu0 0.0
        %828 = vmatpush1.msra.mxu0 0.0
        %829 = vmatprep.subr.mxu0 0.0
        %830 = vmatpush1.msra.mxu0 0.0
        %831 = vmatprep.subr.mxu0 0.0
        %832 = vmatpush1.msra.mxu0 0.0
        %833 = vmatprep.subr.mxu0 0.0
        %834 = vmatpush1.msra.mxu0 0.0
        %835 = vmatprep.subr.mxu0 0.0
        %836 = vmatpush1.msra.mxu0 0.0
        %837 = vmatprep.subr.mxu0 0.0
        %838 = vmatpush1.msra.mxu0 %v603
        %839 = vmatprep.subr.mxu0 0.0
        %840 = vmatpush1.msra.mxu0 %v602
        %841 = vmatprep.subr.mxu0 0.0
        %842 = vmatpush1.msra.mxu0 %v601
        %843 = vmatprep.subr.mxu0 0.0
        %844 = vmatpush1.msra.mxu0 %v600
        %845 = vmatprep.subr.mxu0 0.0
        %846 = vmatpush1.msra.mxu0 %v599
        %847 = vmatprep.subr.mxu0 0.0
        %848 = vmatpush1.msra.mxu0 %v598
        %849 = vmatprep.subr.mxu0 0.0
        %850 = vmatpush1.msra.mxu0 %v597
        %851 = vmatprep.subr.mxu0 0.0
        %852 = vmatpush1.msra.mxu0 %v596
        %853 = vmatprep.subr.mxu0 0.0
        %854 = vmatpush2.msra.mxu0 0.0
        %855 = vmatprep.subr.mxu0 0.0
        %856 = vmatpush2.msra.mxu0 0.0
        %857 = vmatprep.subr.mxu0 0.0
        %858 = vmatpush2.msra.mxu0 0.0
        %859 = vmatprep.subr.mxu0 0.0
        %860 = vmatpush2.msra.mxu0 0.0
        %861 = vmatprep.subr.mxu0 0.0
        %862 = vmatpush2.msra.mxu0 0.0
        %863 = vmatprep.subr.mxu0 0.0
        %864 = vmatpush2.msra.mxu0 0.0
        %865 = vmatprep.subr.mxu0 0.0
        %866 = vmatpush2.msra.mxu0 0.0
        %867 = vmatprep.subr.mxu0 0.0
        %868 = vmatpush2.msra.mxu0 0.0
        %869 = vmatprep.subr.mxu0 0.0
        %870 = vmatpush2.msra.mxu0 0.0
        %871 = vmatprep.subr.mxu0 0.0
        %872 = vmatpush2.msra.mxu0 0.0
        %873 = vmatprep.subr.mxu0 0.0
        %874 = vmatpush2.msra.mxu0 0.0
        %875 = vmatprep.subr.mxu0 0.0
        %876 = vmatpush2.msra.mxu0 0.0
        %877 = vmatprep.subr.mxu0 0.0
        %878 = vmatpush2.msra.mxu0 0.0
        %879 = vmatprep.subr.mxu0 0.0
        %880 = vmatpush2.msra.mxu0 0.0
        %881 = vmatprep.subr.mxu0 0.0
        %882 = vmatpush2.msra.mxu0 0.0
        %883 = vmatprep.subr.mxu0 0.0
        %884 = vmatpush2.msra.mxu0 0.0
        %885 = vmatprep.mubr.f32.mxu0 0.0
        %886 = vmatmul.mubr.f32.gmra.mxu0 %v819
        %v887 = vpop.f32.mrf.mxu0
        %v888 = vadd.f32 %v623, %v887
        %v889 = vpop.f32.mrf.mxu0
        %890 = vdwg.mxu0
        %v891 = vmul.f32 %v888, 0.5
        %v892 = vmul.f32 %v888, %v700
        %v893 = verf.f32.pop %v892
        %v894 = vadd.f32 %v893, 1.0
        %v895 = vmul.f32 %v891, %v894
        %v897 = vsel %vm625, %v895, 0
        %899 = vmatprep.subr.mxu0 0.0
        %900 = vmatpush1.msra.mxu0 0.0
        %901 = vmatprep.subr.mxu0 0.0
        %902 = vmatpush1.msra.mxu0 0.0
        %903 = vmatprep.subr.mxu0 0.0
        %904 = vmatpush1.msra.mxu0 0.0
        %905 = vmatprep.subr.mxu0 0.0
        %906 = vmatpush1.msra.mxu0 0.0
        %907 = vmatprep.subr.mxu0 0.0
        %908 = vmatpush1.msra.mxu0 0.0
        %909 = vmatprep.subr.mxu0 0.0
        %910 = vmatpush1.msra.mxu0 0.0
        %911 = vmatprep.subr.mxu0 0.0
        %912 = vmatpush1.msra.mxu0 0.0
        %913 = vmatprep.subr.mxu0 0.0
        %914 = vmatpush1.msra.mxu0 0.0
        %915 = vmatprep.subr.mxu0 0.0
        %916 = vmatpush1.msra.mxu0 %v612
        %917 = vmatprep.subr.mxu0 0.0
        %918 = vmatpush1.msra.mxu0 %v611
        %919 = vmatprep.subr.mxu0 0.0
        %920 = vmatpush1.msra.mxu0 %v610
        %921 = vmatprep.subr.mxu0 0.0
        %922 = vmatpush1.msra.mxu0 %v609
        %923 = vmatprep.subr.mxu0 0.0
        %924 = vmatpush1.msra.mxu0 %v608
        %925 = vmatprep.subr.mxu0 0.0
        %926 = vmatpush1.msra.mxu0 %v607
        %927 = vmatprep.subr.mxu0 0.0
        %928 = vmatpush1.msra.mxu0 %v606
        %929 = vmatprep.subr.mxu0 0.0
        %930 = vmatpush1.msra.mxu0 %v605
        %931 = vmatprep.subr.mxu0 0.0
        %932 = vmatpush2.msra.mxu0 0.0
        %933 = vmatprep.subr.mxu0 0.0
        %934 = vmatpush2.msra.mxu0 0.0
        %935 = vmatprep.subr.mxu0 0.0
        %936 = vmatpush2.msra.mxu0 0.0
        %937 = vmatprep.subr.mxu0 0.0
        %938 = vmatpush2.msra.mxu0 0.0
        %939 = vmatprep.subr.mxu0 0.0
        %940 = vmatpush2.msra.mxu0 0.0
        %941 = vmatprep.subr.mxu0 0.0
        %942 = vmatpush2.msra.mxu0 0.0
        %943 = vmatprep.subr.mxu0 0.0
        %944 = vmatpush2.msra.mxu0 0.0
        %945 = vmatprep.subr.mxu0 0.0
        %946 = vmatpush2.msra.mxu0 0.0
        %947 = vmatprep.subr.mxu0 0.0
        %948 = vmatpush2.msra.mxu0 0.0
        %949 = vmatprep.subr.mxu0 0.0
        %950 = vmatpush2.msra.mxu0 0.0
        %951 = vmatprep.subr.mxu0 0.0
        %952 = vmatpush2.msra.mxu0 0.0
        %953 = vmatprep.subr.mxu0 0.0
        %954 = vmatpush2.msra.mxu0 0.0
        %955 = vmatprep.subr.mxu0 0.0
        %956 = vmatpush2.msra.mxu0 0.0
        %957 = vmatprep.subr.mxu0 0.0
        %958 = vmatpush2.msra.mxu0 0.0
        %959 = vmatprep.subr.mxu0 0.0
        %960 = vmatpush2.msra.mxu0 0.0
        %961 = vmatprep.subr.mxu0 0.0
        %962 = vmatpush2.msra.mxu0 0.0
        %963 = vmatprep.mubr.f32.mxu0 0.0
        %964 = vmatmul.mubr.f32.gmra.mxu0 %v897
        %v965 = vpop.f32.mrf.mxu0
        %v966 = vadd.f32 %v709, %v965
        %v967 = vpop.f32.mrf.mxu0
        %968 = vdwg.mxu0
        %v969 = vmul.f32 %v966, 0.5
        %v970 = vmul.f32 %v966, %v700
        %v971 = verf.f32.pop %v970
        %v972 = vadd.f32 %v971, 1.0
        %v973 = vmul.f32 %v969, %v972
        %v974 = vadd.f32 %v817, %v973
        %v975 = vsel %vm625, %v974, 0.0
        %976 = vadd.xlane.f32.xlu0 %v975
        %v977 = vpop.xlane.xlu0 %976
        %v978 = vmul.f32 %v977, %v793
        %v979 = vsub.f32 %v974, %v978
        %v980 = vmul.f32 %v979, %v979
        %v981 = vsel %vm625, %v980, 0.0
        %982 = vadd.xlane.f32.xlu0 %v981
        %v983 = vpop.xlane.xlu0 %982
        %v984 = vmul.f32 %v983, %v793
        %v985 = vadd.f32 %v984, 1e-05
        %v986 = vrsqrt.pop %v985
        %v987 = vmul.f32 %v979, %v986
        %v988 = vmul.f32 %v808, %v987
        %v989 = vadd.f32 %v988, %v815
        %v990 = vld [vmem:[%s10] sm:$0xff]
        %v991 = vld [vmem:[%s10 + $0x8] sm:$0xff]
        %v992 = vld [vmem:[%s10 + $0x10] sm:$0xff]
        %v993 = vld [vmem:[%s10 + $0x18] sm:$0xff]
        %v994 = vld [vmem:[%s10 + $0x20] sm:$0xff]
        %v995 = vld [vmem:[%s10 + $0x28] sm:$0xff]
        %v996 = vld [vmem:[%s10 + $0x30] sm:$0xff]
        %v997 = vld [vmem:[%s10 + $0x38] sm:$0xff]
        %v998 = vld [vmem:[%s11] sm:$0x1]
        %v1000 = vlaneseq
        %v1001 = vshrl.u32 %v1000, 7
        %v1002 = vsub.s32 0, %v1001
        %v1003 = vrot.slane %v998, %v1002
        %v1006 = vsel %vm625, %v989, 0
        %1008 = vmatprep.subr.mxu0 0.0
        %1009 = vmatpush1.msra.mxu0 0.0
        %1010 = vmatprep.subr.mxu0 0.0
        %1011 = vmatpush1.msra.mxu0 0.0
        %1012 = vmatprep.subr.mxu0 0.0
        %1013 = vmatpush1.msra.mxu0 0.0
        %1014 = vmatprep.subr.mxu0 0.0
        %1015 = vmatpush1.msra.mxu0 0.0
        %1016 = vmatprep.subr.mxu0 0.0
        %1017 = vmatpush1.msra.mxu0 0.0
        %1018 = vmatprep.subr.mxu0 0.0
        %1019 = vmatpush1.msra.mxu0 0.0
        %1020 = vmatprep.subr.mxu0 0.0
        %1021 = vmatpush1.msra.mxu0 0.0
        %1022 = vmatprep.subr.mxu0 0.0
        %1023 = vmatpush1.msra.mxu0 0.0
        %1024 = vmatprep.subr.mxu0 0.0
        %1025 = vmatpush1.msra.mxu0 %v997
        %1026 = vmatprep.subr.mxu0 0.0
        %1027 = vmatpush1.msra.mxu0 %v996
        %1028 = vmatprep.subr.mxu0 0.0
        %1029 = vmatpush1.msra.mxu0 %v995
        %1030 = vmatprep.subr.mxu0 0.0
        %1031 = vmatpush1.msra.mxu0 %v994
        %1032 = vmatprep.subr.mxu0 0.0
        %1033 = vmatpush1.msra.mxu0 %v993
        %1034 = vmatprep.subr.mxu0 0.0
        %1035 = vmatpush1.msra.mxu0 %v992
        %1036 = vmatprep.subr.mxu0 0.0
        %1037 = vmatpush1.msra.mxu0 %v991
        %1038 = vmatprep.subr.mxu0 0.0
        %1039 = vmatpush1.msra.mxu0 %v990
        %1040 = vmatprep.subr.mxu0 0.0
        %1041 = vmatpush2.msra.mxu0 0.0
        %1042 = vmatprep.subr.mxu0 0.0
        %1043 = vmatpush2.msra.mxu0 0.0
        %1044 = vmatprep.subr.mxu0 0.0
        %1045 = vmatpush2.msra.mxu0 0.0
        %1046 = vmatprep.subr.mxu0 0.0
        %1047 = vmatpush2.msra.mxu0 0.0
        %1048 = vmatprep.subr.mxu0 0.0
        %1049 = vmatpush2.msra.mxu0 0.0
        %1050 = vmatprep.subr.mxu0 0.0
        %1051 = vmatpush2.msra.mxu0 0.0
        %1052 = vmatprep.subr.mxu0 0.0
        %1053 = vmatpush2.msra.mxu0 0.0
        %1054 = vmatprep.subr.mxu0 0.0
        %1055 = vmatpush2.msra.mxu0 0.0
        %1056 = vmatprep.subr.mxu0 0.0
        %1057 = vmatpush2.msra.mxu0 0.0
        %1058 = vmatprep.subr.mxu0 0.0
        %1059 = vmatpush2.msra.mxu0 0.0
        %1060 = vmatprep.subr.mxu0 0.0
        %1061 = vmatpush2.msra.mxu0 0.0
        %1062 = vmatprep.subr.mxu0 0.0
        %1063 = vmatpush2.msra.mxu0 0.0
        %1064 = vmatprep.subr.mxu0 0.0
        %1065 = vmatpush2.msra.mxu0 0.0
        %1066 = vmatprep.subr.mxu0 0.0
        %1067 = vmatpush2.msra.mxu0 0.0
        %1068 = vmatprep.subr.mxu0 0.0
        %1069 = vmatpush2.msra.mxu0 0.0
        %1070 = vmatprep.subr.mxu0 0.0
        %1071 = vmatpush2.msra.mxu0 0.0
        %1072 = vmatprep.mubr.f32.mxu0 0.0
        %1073 = vmatmul.mubr.f32.gmra.mxu0 %v1006
        %v1074 = vpop.f32.mrf.mxu0
        %v1075 = vadd.f32 %v1003, %v1074
        %v1076 = vpop.f32.mrf.mxu0
        %1077 = vdwg.mxu0
        %vm1078 = vcmask 130048
        %1079 = vst.msk [vmem:[%s575] sm:$0xff] %vm1078, %v1075
        %s1080 = sand.u32 %s332, 1
        %s1081 = scalar_lea.sflag [#allocation4], %s1080
        %s1082 = sand.u32 %s332, 1
        %s1083 = smul.addr %s1082, 8
        %s1084 = scalar_lea.vmem [#allocation14], %s1083
        // Predicated region
        $region97: #{tpu_custom_call.1} parent=67 // pred_check
          %p1085 = pneg %p342
        $region98: #{tpu_custom_call.1} parent=67 // pred_check_branch
          %1087 = sbr.rel (%p1085) target = $region100
        $region99: #{tpu_custom_call.1} parent=67 // pred_region
          %s1089 = ssub.s32 128, 128
          %1090 = vsyncadd %s1081, %s1089
          %s1091 = sadd.s32 %s39, %s38
          %s1092 = smul.addr %s1091, 128
          %s1093 = scalar_lea.hbm %s12, %s1092
          %s1095 = sshll.u32 %s1084, 4
          %s1096 = int_to_ptr.vmem [resolvable:$true] %s1095
          %1098 = dma.vmem_to_hbm [thread:$0]  %s1096, 128, %s1093, %s1081
        $region100: #{tpu_custom_call.1} parent=67 // pred_fallthru
          _
      $region68: #{tpu_custom_call.1} parent=5 // pred_fallthru
        _
      %p1099 = scmp.le.s32.totalorder 2, %s29
      // Predicated region
      $region101: #{tpu_custom_call.1} parent=5 // pred_check
        %p1100 = pneg %p1099
      $region102: #{tpu_custom_call.1} parent=5 // pred_check_branch
        %1102 = sbr.rel (%p1100) target = $region104
      $region103: #{tpu_custom_call.1} parent=5 // pred_region
        %s1103 = ssub.s32 %s29, 2
        // Predicated region
        $region105: #{tpu_custom_call.1} parent=103 // pred_check
          %p1104 = pneg %p348
        $region106: #{tpu_custom_call.1} parent=103 // pred_check_branch
          %1106 = sbr.rel (%p1104) target = $region108
        $region107: #{tpu_custom_call.1} parent=103 // pred_region
          %s1107 = sand.u32 %s333, 1
          %s1108 = scalar_lea.sflag [#allocation4], %s1107
          %s1109 = sand.u32 %s333, 1
          %s1110 = smul.addr %s1109, 8
          %s1111 = scalar_lea.vmem [#allocation14], %s1110
          %1112 = dma.done %s1108, 128
        $region108: #{tpu_custom_call.1} parent=103 // pred_fallthru
          _
      $region104: #{tpu_custom_call.1} parent=5 // pred_fallthru
        _
    $region6: #{tpu_custom_call.1} parent=1 // loop_footer
      %s33 = sadd.s32 1, %s29
    $region7: #{tpu_custom_call.1} parent=1 // loop_footer_branch
      %28 = sbr.rel target = $region3
    $region8: #{tpu_custom_call.1} parent=1 // loop_exit
      _
    %1113 = vsyncpa [#allocation3], 1
    %s1114 = scalar_lea.sflag [#allocation3], 1
    %1115 = vsyncpa %s1114, 1
    %1116 = vsyncpa [#allocation6], 1
    %s1117 = scalar_lea.sflag [#allocation6], 1
    %1118 = vsyncpa %s1117, 1
    %1119 = vsyncpa [#allocation9], 1
    %1120 = vsyncpa [#allocation12], 1
    %1121 = vsyncpa [#allocation4], 1
    %s1122 = scalar_lea.sflag [#allocation4], 1
    %1123 = vsyncpa %s1122, 1

</llo_original>
